<compile_context>
chip_gen: v5e
topology: v5e:2x2
jax: 0.10.0
libtpu: 0.0.40
codegen_flags: <defaults>
</compile_context>

<pallas_src>
import numpy as np
import jax
import jax.numpy as jnp
from jax import lax
from jax.experimental import pallas as pl
from jax.experimental.pallas import tpu as pltpu


def _bilinear_matrix(n_in: int, n_out: int) -> np.ndarray:
    """Interpolation matrix U (n_out, n_in) for align_corners=True bilinear resize."""
    if n_out == 1:
        u = np.zeros((1, n_in), np.float64)
        u[0, 0] = 1.0
        return u.astype(np.float32)
    src = np.arange(n_out, dtype=np.float64) * (n_in - 1) / (n_out - 1)
    i0 = np.clip(np.floor(src).astype(np.int64), 0, n_in - 1)
    i1 = np.minimum(i0 + 1, n_in - 1)
    frac = src - i0
    u = np.zeros((n_out, n_in), np.float64)
    np.add.at(u, (np.arange(n_out), i0), 1.0 - frac)
    np.add.at(u, (np.arange(n_out), i1), frac)
    return u.astype(np.float32)


def _shifted_h_matrices(H: int, H2: int) -> np.ndarray:
    """UhS[dy, p, h] = Uh[p+dy-1, h], zero rows where p+dy-1 is out of range.

    Folds the 3x3 conv's row offset (dy) and the H zero-padding into the H-upsample matrix.
    """
    uh = _bilinear_matrix(H, H2)                       # (H2, H)
    uhs = np.zeros((3, H2, H), np.float32)
    for dy in range(3):
        for p in range(H2):
            r = p + dy - 1
            if 0 <= r < H2:
                uhs[dy, p, :] = uh[r, :]
    return uhs


def _kw_matrix(W: int, W2: int, Cin: int) -> np.ndarray:
    """Kw = Uw^T (Kronecker) I_Cin so that (H, W*Cin) @ Kw is the W-upsample in NHWC-flat layout."""
    uw = _bilinear_matrix(W, W2)                       # (W2, W)
    eye = np.eye(Cin, dtype=np.float32)
    kw = np.einsum('qw,ij->wiqj', uw, eye)             # (W, Cin, W2, Cin)
    return np.ascontiguousarray(kw.reshape(W * Cin, W2 * Cin)).astype(np.float32)


def _conv_band_matrix(w_oihw, W2: int):
    """Bcat (3*W2*Cin, W2*Cout): all 3x3 taps, channel mixing and W zero-padding in one matrix.

    Bcat[dy*W2*Cin + wp*Cin + ci, q*Cout + co] = w[co, ci, dy, dx] with dx = wp - q + 1
    when dx in {0,1,2}, else 0.
    """
    Cout, Cin, _, _ = w_oihw.shape
    q = np.arange(W2)[:, None]
    wp = np.arange(W2)[None, :]
    sel = np.stack([(wp == q + dx - 1) for dx in range(3)], axis=0).astype(np.float32)
    sel = jnp.asarray(sel)                             # (dx, q, wp)
    w_hwio = jnp.transpose(w_oihw, (2, 3, 1, 0))       # (dy, dx, ci, co)
    b = jnp.einsum('xqw,yxic->ywiqc', sel, w_hwio,
                   precision=lax.Precision.HIGHEST)    # (dy, wp, ci, q, co)
    return b.reshape(3 * W2 * Cin, W2 * Cout)


def build_upward_constants(w_oihw, bias, H: int, W: int):
    """Precompute the fused matrices once per weight set (cheap, constant-folds under jit)."""
    Cout, Cin = int(w_oihw.shape[0]), int(w_oihw.shape[1])
    H2, W2 = 2 * H, 2 * W
    C2 = W2 * Cout
    kw = jnp.asarray(_kw_matrix(W, W2, Cin))                           # (W*Cin, W2*Cin)
    bcat3 = _conv_band_matrix(w_oihw, W2).reshape(3, W2 * Cin, C2)     # (3, W2*Cin, C2)
    # KBcat = [Kw @ Bcat_0 | Kw @ Bcat_1 | Kw @ Bcat_2]  on the lane axis.
    kbcat = jnp.einsum('ka,dab->kdb', kw, bcat3,
                       precision=lax.Precision.HIGHEST)
    kbcat = kbcat.reshape(W * Cin, 3 * C2).astype(jnp.float32)         # (W*Cin, 3*C2)
    uhs = jnp.asarray(_shifted_h_matrices(H, H2))                      # (3, H2, H)
    b2d = jnp.tile(bias.astype(jnp.float32), (W2,)).reshape(1, C2)     # (1, C2)
    return kbcat, uhs, b2d


def upward_kernel(x_ref, kb_ref, uhs_ref, b_ref, o_ref):
    # x_ref  : (B_blk, H, W*Cin)       NHWC-flat input chunk
    # kb_ref : (W*Cin, 3*W2*Cout)      fused (W-upsample x conv-band) matrix
    # uhs_ref: (3, H2, H)              H-upsample, pre-shifted for conv rows dy = 0,1,2
    # b_ref  : (1, W2*Cout)            bias tiled along W2
    # o_ref  : (B_blk, H2, W2*Cout)    lane-dense output chunk
    b_blk, h, wc = x_ref.shape
    c2 = b_ref.shape[-1]

    # Fold the chunk's batch into M for the big matmul.
    x2 = x_ref[...].astype(jnp.float32).reshape(b_blk * h, wc)          # (B_blk*H, W*Cin)
    t = jnp.dot(x2, kb_ref[...], preferred_element_type=jnp.float32)    # (B_blk*H, 3*C2)

    bias = b_ref[...]                                                   # (1, C2)
    uhs0 = uhs_ref[0]
    uhs1 = uhs_ref[1]
    uhs2 = uhs_ref[2]

    for b in range(b_blk):   # static unroll; B_blk is tiny (1 or 2 here)
        tb = t[b * h:(b + 1) * h, :]                                    # (H, 3*C2)
        acc = jnp.dot(uhs0, tb[:, 0:c2], preferred_element_type=jnp.float32)
        acc = acc + jnp.dot(uhs1, tb[:, c2:2 * c2], preferred_element_type=jnp.float32)
        acc = acc + jnp.dot(uhs2, tb[:, 2 * c2:3 * c2], preferred_element_type=jnp.float32)
        o_ref[b] = (acc + bias).astype(o_ref.dtype)                     # lane-dense store


def upward_pallas(x_nchw, w_oihw, bias, *, num_chunks=None):
    """Equivalent of Upward.forward. x: (N, Cin, H, W) -> (N, Cout, 2H, 2W)."""
    N, Cin, H, W = x_nchw.shape
    Cout = w_oihw.shape[0]
    H2, W2 = 2 * H, 2 * W
    C2 = W2 * Cout

    if num_chunks is None:
        # 2 chunks -> both v7x TensorCores get work; pass num_chunks=1 on single-TC
        # v5e/v6e to collapse the batch grid into one step (batch folds into matmul M).
        num_chunks = 2 if (N >= 2 and N % 2 == 0) else 1
    assert N % num_chunks == 0
    B_blk = N // num_chunks

    kbcat, uhs, b2d = build_upward_constants(w_oihw, bias, H, W)

    # NCHW boundary kept to match the PyTorch module; stay NHWC end-to-end in a real
    # network to avoid these HBM transposes.
    x2d = jnp.transpose(x_nchw, (0, 2, 3, 1)).reshape(N, H, W * Cin)

    out2d = pl.pallas_call(
        upward_kernel,
        out_shape=jax.ShapeDtypeStruct((N, H2, C2), x_nchw.dtype),
        grid_spec=pltpu.PrefetchScalarGridSpec(
            num_scalar_prefetch=0,
            grid=(num_chunks,),
            in_specs=[
                pl.BlockSpec((B_blk, H, W * Cin), lambda n: (n, 0, 0)),
                pl.BlockSpec((W * Cin, 3 * C2), lambda n: (0, 0)),
                pl.BlockSpec((3, H2, H), lambda n: (0, 0, 0)),
                pl.BlockSpec((1, C2), lambda n: (0, 0)),
            ],
            out_specs=pl.BlockSpec((B_blk, H2, C2), lambda n: (n, 0, 0)),
        ),
        compiler_params=pltpu.CompilerParams(dimension_semantics=("parallel",)),
    )(x2d, kbcat, uhs, b2d)

    # (N, H2, W2*Cout) -> (N, Cout, H2, W2)
    return jnp.transpose(out2d.reshape(N, H2, W2, Cout), (0, 3, 1, 2))


def upward_reference(x_nchw, w_oihw, bias):
    """Pure-JAX reference (same semantics as the PyTorch module with align_corners=True)."""
    N, Cin, H, W = x_nchw.shape
    H2, W2 = 2 * H, 2 * W
    uh = jnp.asarray(_bilinear_matrix(H, H2))
    uw = jnp.asarray(_bilinear_matrix(W, W2))
    up = jnp.einsum('oh,nchw->ncow', uh, x_nchw)
    up = jnp.einsum('pw,ncow->ncop', uw, up)                            # (N, Cin, H2, W2)
    out = lax.conv_general_dilated(
        up, w_oihw, window_strides=(1, 1), padding=((1, 1), (1, 1)),
        dimension_numbers=('NCHW', 'OIHW', 'NCHW'))
    return out + bias.reshape(1, -1, 1, 1)


if __name__ == "__main__":
    key = jax.random.PRNGKey(0)
    k_x, k_w, k_b = jax.random.split(key, 3)

    N, in_channel, out_channel, H, W = 2, 4, 8, 16, 16
    x = jax.random.normal(k_x, (N, in_channel, H, W), jnp.float32)

    # Deterministic Conv2d-style init (uniform in +/- 1/sqrt(fan_in)).
    fan_in = in_channel * 3 * 3
    bound = 1.0 / np.sqrt(fan_in)
    w = jax.random.uniform(k_w, (out_channel, in_channel, 3, 3),
                           minval=-bound, maxval=bound, dtype=jnp.float32)
    b = jax.random.uniform(k_b, (out_channel,),
                           minval=-bound, maxval=bound, dtype=jnp.float32)

    upward_fn = jax.jit(upward_pallas)   # constant construction folds / transfers once
    out = jax.block_until_ready(upward_fn(x, w, b))
    ref = jax.block_until_ready(upward_reference(x, w, b))

    assert out.shape == (N, out_channel, 2 * H, 2 * W), out.shape
    np.testing.assert_allclose(np.asarray(out), np.asarray(ref), rtol=1e-4, atol=1e-4)
    print("KERNEL_OK")
</pallas_src>

<mosaic_0001>
module attributes {stable_mosaic.version = 11 : i64} {
  func.func @upward_kernel(%arg0: i32, %arg1: memref<1x16x64xf32, #tpu.memory_space<vmem>>, %arg2: memref<64x768xf32, #tpu.memory_space<vmem>>, %arg3: memref<3x32x16xf32, #tpu.memory_space<vmem>>, %arg4: memref<1x256xf32, #tpu.memory_space<vmem>>, %arg5: memref<1x32x256xf32, #tpu.memory_space<vmem>>) attributes {dimension_semantics = [#tpu.dimension_semantics<parallel>], iteration_bounds = array<i64: 2>, scalar_prefetch = 0 : i64, scratch_operands = 0 : i64, tpu.core_type = #tpu.core_type<tc>, window_params = [{transform_indices = @transform_0, window_bounds = array<i64: 1, 16, 64>}, {pipeline_mode = #tpu.pipeline_mode<synchronous>, transform_indices = @transform_1, window_bounds = array<i64: 64, 768>}, {pipeline_mode = #tpu.pipeline_mode<synchronous>, transform_indices = @transform_2, window_bounds = array<i64: 3, 32, 16>}, {pipeline_mode = #tpu.pipeline_mode<synchronous>, transform_indices = @transform_3, window_bounds = array<i64: 1, 256>}, {transform_indices = @transform_4, window_bounds = array<i64: 1, 32, 256>}]} {
    %c0 = arith.constant 0 : index
    %c0_0 = arith.constant 0 : index
    %c0_1 = arith.constant 0 : index
    %0 = vector.load %arg1[%c0, %c0_0, %c0_1] : memref<1x16x64xf32, #tpu.memory_space<vmem>>, vector<1x16x64xf32>
    %1 = vector.shape_cast %0 : vector<1x16x64xf32> to vector<16x64xf32>
    %c0_2 = arith.constant 0 : index
    %c0_3 = arith.constant 0 : index
    %2 = vector.load %arg2[%c0_2, %c0_3] : memref<64x768xf32, #tpu.memory_space<vmem>>, vector<64x768xf32>
    %cst = arith.constant dense<0.000000e+00> : vector<16x768xf32>
    %3 = tpu.matmul %1, %2, %cst {dimension_numbers = #tpu.dot_dimension_numbers<[1], [0], [0], [1], [0, 0, 1, 1], [], []>} : vector<16x64xf32>, vector<64x768xf32>, vector<16x768xf32> -> vector<16x768xf32>
    %c0_4 = arith.constant 0 : index
    %c0_5 = arith.constant 0 : index
    %4 = vector.load %arg4[%c0_4, %c0_5] : memref<1x256xf32, #tpu.memory_space<vmem>>, vector<1x256xf32>
    %c0_6 = arith.constant 0 : index
    %c0_7 = arith.constant 0 : index
    %c0_8 = arith.constant 0 : index
    %5 = vector.load %arg3[%c0_6, %c0_7, %c0_8] : memref<3x32x16xf32, #tpu.memory_space<vmem>>, vector<1x32x16xf32>
    %6 = vector.shape_cast %5 : vector<1x32x16xf32> to vector<32x16xf32>
    %c1 = arith.constant 1 : index
    %c0_9 = arith.constant 0 : index
    %c0_10 = arith.constant 0 : index
    %7 = vector.load %arg3[%c1, %c0_9, %c0_10] : memref<3x32x16xf32, #tpu.memory_space<vmem>>, vector<1x32x16xf32>
    %8 = vector.shape_cast %7 : vector<1x32x16xf32> to vector<32x16xf32>
    %c2 = arith.constant 2 : index
    %c0_11 = arith.constant 0 : index
    %c0_12 = arith.constant 0 : index
    %9 = vector.load %arg3[%c2, %c0_11, %c0_12] : memref<3x32x16xf32, #tpu.memory_space<vmem>>, vector<1x32x16xf32>
    %10 = vector.shape_cast %9 : vector<1x32x16xf32> to vector<32x16xf32>
    %11 = vector.extract_strided_slice %3 {offsets = [0, 0], sizes = [16, 256], strides = [1, 1]} : vector<16x768xf32> to vector<16x256xf32>
    %cst_13 = arith.constant dense<0.000000e+00> : vector<32x256xf32>
    %12 = tpu.matmul %6, %11, %cst_13 {dimension_numbers = #tpu.dot_dimension_numbers<[1], [0], [0], [1], [0, 0, 1, 1], [], []>} : vector<32x16xf32>, vector<16x256xf32>, vector<32x256xf32> -> vector<32x256xf32>
    %13 = vector.extract_strided_slice %3 {offsets = [0, 256], sizes = [16, 256], strides = [1, 1]} : vector<16x768xf32> to vector<16x256xf32>
    %cst_14 = arith.constant dense<0.000000e+00> : vector<32x256xf32>
    %14 = tpu.matmul %8, %13, %cst_14 {dimension_numbers = #tpu.dot_dimension_numbers<[1], [0], [0], [1], [0, 0, 1, 1], [], []>} : vector<32x16xf32>, vector<16x256xf32>, vector<32x256xf32> -> vector<32x256xf32>
    %15 = arith.addf %12, %14 : vector<32x256xf32>
    %16 = vector.extract_strided_slice %3 {offsets = [0, 512], sizes = [16, 256], strides = [1, 1]} : vector<16x768xf32> to vector<16x256xf32>
    %cst_15 = arith.constant dense<0.000000e+00> : vector<32x256xf32>
    %17 = tpu.matmul %10, %16, %cst_15 {dimension_numbers = #tpu.dot_dimension_numbers<[1], [0], [0], [1], [0, 0, 1, 1], [], []>} : vector<32x16xf32>, vector<16x256xf32>, vector<32x256xf32> -> vector<32x256xf32>
    %18 = arith.addf %15, %17 : vector<32x256xf32>
    %19 = vector.broadcast %4 : vector<1x256xf32> to vector<32x256xf32>
    %20 = arith.addf %18, %19 : vector<32x256xf32>
    %c0_16 = arith.constant 0 : index
    %c0_17 = arith.constant 0 : index
    %c0_18 = arith.constant 0 : index
    %21 = vector.load %arg5[%c0_16, %c0_17, %c0_18] : memref<1x32x256xf32, #tpu.memory_space<vmem>>, vector<1x32x256xf32>
    %22 = vector.shape_cast %21 : vector<1x32x256xf32> to vector<32x256xf32>
    %23 = vector.shape_cast %20 : vector<32x256xf32> to vector<1x32x256xf32>
    tpu.vector_store %arg5[%c0_16, %c0_17, %c0_18], %23 {strides = array<i32>} : memref<1x32x256xf32, #tpu.memory_space<vmem>>, vector<1x32x256xf32>,
    return
  }
  func.func @transform_0(%arg0: i32) -> (i32, i32, i32) {
    %c0_i32 = arith.constant 0 : i32
    %c0_i32_0 = arith.constant 0 : i32
    %c0_i32_1 = arith.constant 0 : i32
    return %arg0, %c0_i32, %c0_i32_0 : i32, i32, i32
  }
  func.func @transform_1(%arg0: i32) -> (i32, i32) {
    %c0_i32 = arith.constant 0 : i32
    %c0_i32_0 = arith.constant 0 : i32
    %c0_i32_1 = arith.constant 0 : i32
    return %c0_i32, %c0_i32_0 : i32, i32
  }
  func.func @transform_2(%arg0: i32) -> (i32, i32, i32) {
    %c0_i32 = arith.constant 0 : i32
    %c0_i32_0 = arith.constant 0 : i32
    %c0_i32_1 = arith.constant 0 : i32
    %c0_i32_2 = arith.constant 0 : i32
    return %c0_i32, %c0_i32_0, %c0_i32_1 : i32, i32, i32
  }
  func.func @transform_3(%arg0: i32) -> (i32, i32) {
    %c0_i32 = arith.constant 0 : i32
    %c0_i32_0 = arith.constant 0 : i32
    %c0_i32_1 = arith.constant 0 : i32
    return %c0_i32, %c0_i32_0 : i32, i32
  }
  func.func @transform_4(%arg0: i32) -> (i32, i32, i32) {
    %c0_i32 = arith.constant 0 : i32
    %c0_i32_0 = arith.constant 0 : i32
    %c0_i32_1 = arith.constant 0 : i32
    return %arg0, %c0_i32, %c0_i32_0 : i32, i32, i32
  }
}

</mosaic_0001>

<llo_original>
// kernel: tile.8
$region0: #{tile.8}
  #allocation0 [shape = 's32[1]{0}', space=sflag, size = 0x4, scoped, tag = 'scoped memory for tile.8']
  %s0 = inlined_call_operand.vmem [shape: f32[8], index: 0, kind: input, shape index: {}]
  %s1 = inlined_call_operand.vmem [shape: f32[32,8], index: 1, kind: output, shape index: {}]
  // Predicated region
  $region2: #{tile.8} parent=0 // pred_check
    _
  $region3: #{tile.8} parent=0 // pred_check_branch
    %3 = sbr.rel (0) target = $region5
  $region4: #{tile.8} parent=0 // pred_region
    _
  $region5: #{tile.8} parent=0 // pred_fallthru
    _
  %v4 = vld [vmem:[%s0] ss:$0 sm:$0xff]
  %5 = vst [vmem:[%s1] sm:$0xff] %v4
  %s6 = scalar_lea.vmem %s1, 8
  %7 = vst [vmem:[%s6] sm:$0xff] %v4
  %s8 = scalar_lea.vmem %s1, 16
  %9 = vst [vmem:[%s8] sm:$0xff] %v4
  %s10 = scalar_lea.vmem %s1, 24
  %11 = vst [vmem:[%s10] sm:$0xff] %v4

// kernel: tile.9
$region0: #{tile.9}
  %s0 = inlined_call_operand.vmem [shape: f32[32,8], index: 0, kind: input, shape index: {}]
  %s1 = inlined_call_operand.vmem [shape: f32[1,256], index: 1, kind: output, shape index: {}]
  $region1: #{tile.9} parent=0
    #allocation0 [shape = 'u8[8192]{0}', space=vmem, size = 0x2000, scoped, tag = 'scoped mem for output reshape']
    %s2 = smov 3
    %v3 = vld [vmem:[%s0] ss:$16 sm:%s2]
    %vm4 = vcmask 64512
    %5 = vst.msk [vmem:[#allocation0] ss:$8 sm:$0x3] %vm4, %v3
    %s6 = scalar_lea.vmem %s0, 15
    %s7 = smov 3
    %v8 = vld [vmem:[%s6] ss:$16 sm:%s7]
    %9 = vrot.lane.b32.xlu0 %v8, 120
    %v10 = vpop.permute.xlu0 %9
    %vm11 = vcmask 1048512
    %12 = vst.msk [vmem:[#allocation0] ss:$8 sm:$0x3] %vm11, %v10
    %s13 = scalar_lea.vmem %s0, 14
    %s14 = smov 3
    %v15 = vld [vmem:[%s13] ss:$16 sm:%s14]
    %16 = vrot.lane.b32.xlu0 %v15, 112
    %v17 = vpop.permute.xlu0 %16
    %vm18 = vcmask 982912
    %19 = vst.msk [vmem:[#allocation0] ss:$8 sm:$0x3] %vm18, %v17
    %s20 = scalar_lea.vmem %s0, 13
    %s21 = smov 3
    %v22 = vld [vmem:[%s20] ss:$16 sm:%s21]
    %23 = vrot.lane.b32.xlu0 %v22, 104
    %v24 = vpop.permute.xlu0 %23
    %vm25 = vcmask 917312
    %26 = vst.msk [vmem:[#allocation0] ss:$8 sm:$0x3] %vm25, %v24
    %s27 = scalar_lea.vmem %s0, 12
    %s28 = smov 3
    %v29 = vld [vmem:[%s27] ss:$16 sm:%s28]
    %30 = vrot.lane.b32.xlu0 %v29, 96
    %v31 = vpop.permute.xlu0 %30
    %vm32 = vcmask 851712
    %33 = vst.msk [vmem:[#allocation0] ss:$8 sm:$0x3] %vm32, %v31
    %s34 = scalar_lea.vmem %s0, 11
    %s35 = smov 3
    %v36 = vld [vmem:[%s34] ss:$16 sm:%s35]
    %37 = vrot.lane.b32.xlu0 %v36, 88
    %v38 = vpop.permute.xlu0 %37
    %vm39 = vcmask 786112
    %40 = vst.msk [vmem:[#allocation0] ss:$8 sm:$0x3] %vm39, %v38
    %s41 = scalar_lea.vmem %s0, 10
    %s42 = smov 3
    %v43 = vld [vmem:[%s41] ss:$16 sm:%s42]
    %44 = vrot.lane.b32.xlu0 %v43, 80
    %v45 = vpop.permute.xlu0 %44
    %vm46 = vcmask 720512
    %47 = vst.msk [vmem:[#allocation0] ss:$8 sm:$0x3] %vm46, %v45
    %s48 = scalar_lea.vmem %s0, 9
    %s49 = smov 3
    %v50 = vld [vmem:[%s48] ss:$16 sm:%s49]
    %51 = vrot.lane.b32.xlu0 %v50, 72
    %v52 = vpop.permute.xlu0 %51
    %vm53 = vcmask 654912
    %54 = vst.msk [vmem:[#allocation0] ss:$8 sm:$0x3] %vm53, %v52
    %s55 = scalar_lea.vmem %s0, 8
    %s56 = smov 3
    %v57 = vld [vmem:[%s55] ss:$16 sm:%s56]
    %58 = vrot.lane.b32.xlu0 %v57, 64
    %v59 = vpop.permute.xlu0 %58
    %vm60 = vcmask 589312
    %61 = vst.msk [vmem:[#allocation0] ss:$8 sm:$0x3] %vm60, %v59
    %s62 = scalar_lea.vmem %s0, 7
    %s63 = smov 3
    %v64 = vld [vmem:[%s62] ss:$16 sm:%s63]
    %65 = vrot.lane.b32.xlu0 %v64, 56
    %v66 = vpop.permute.xlu0 %65
    %vm67 = vcmask 523712
    %68 = vst.msk [vmem:[#allocation0] ss:$8 sm:$0x3] %vm67, %v66
    %s69 = scalar_lea.vmem %s0, 6
    %s70 = smov 3
    %v71 = vld [vmem:[%s69] ss:$16 sm:%s70]
    %72 = vrot.lane.b32.xlu0 %v71, 48
    %v73 = vpop.permute.xlu0 %72
    %vm74 = vcmask 458112
    %75 = vst.msk [vmem:[#allocation0] ss:$8 sm:$0x3] %vm74, %v73
    %s76 = scalar_lea.vmem %s0, 5
    %s77 = smov 3
    %v78 = vld [vmem:[%s76] ss:$16 sm:%s77]
    %79 = vrot.lane.b32.xlu0 %v78, 40
    %v80 = vpop.permute.xlu0 %79
    %vm81 = vcmask 392512
    %82 = vst.msk [vmem:[#allocation0] ss:$8 sm:$0x3] %vm81, %v80
    %s83 = scalar_lea.vmem %s0, 4
    %s84 = smov 3
    %v85 = vld [vmem:[%s83] ss:$16 sm:%s84]
    %86 = vrot.lane.b32.xlu0 %v85, 32
    %v87 = vpop.permute.xlu0 %86
    %vm88 = vcmask 326912
    %89 = vst.msk [vmem:[#allocation0] ss:$8 sm:$0x3] %vm88, %v87
    %s90 = scalar_lea.vmem %s0, 3
    %s91 = smov 3
    %v92 = vld [vmem:[%s90] ss:$16 sm:%s91]
    %93 = vrot.lane.b32.xlu0 %v92, 24
    %v94 = vpop.permute.xlu0 %93
    %vm95 = vcmask 261312
    %96 = vst.msk [vmem:[#allocation0] ss:$8 sm:$0x3] %vm95, %v94
    %s97 = scalar_lea.vmem %s0, 2
    %s98 = smov 3
    %v99 = vld [vmem:[%s97] ss:$16 sm:%s98]
    %100 = vrot.lane.b32.xlu0 %v99, 16
    %v101 = vpop.permute.xlu0 %100
    %vm102 = vcmask 195712
    %103 = vst.msk [vmem:[#allocation0] ss:$8 sm:$0x3] %vm102, %v101
    %s104 = scalar_lea.vmem %s0, 1
    %s105 = smov 3
    %v106 = vld [vmem:[%s104] ss:$16 sm:%s105]
    %107 = vrot.lane.b32.xlu0 %v106, 8
    %v108 = vpop.permute.xlu0 %107
    %vm109 = vcmask 130112
    %110 = vst.msk [vmem:[#allocation0] ss:$8 sm:$0x3] %vm109, %v108
    %s112 = ssub.s32 2, 1
    %v113 = vld [vmem:[#allocation0] sm:%s112]
    %s115 = ssub.s32 2, 1
    %116 = vst [vmem:[%s1] sm:%s115] %v113
    %s117 = scalar_lea.vmem [#allocation0], 8
    %v118 = vld [vmem:[%s117] sm:%s112]
    %s120 = ssub.s32 2, 1
    %s121 = scalar_lea.vmem %s1, 1
    %122 = vst [vmem:[%s121] sm:%s120] %v118

// kernel: upward_pallas.1
$region0: #{upward_pallas.1}
  #allocation0 [shape = 'u32[]', space=smem, size = 0x4, offset = 0x4, fixed_abs, tag = 'smem constant byte address 0x4 - core index']
  #allocation1 [shape = 'u32[72,128]{1,0:T(1,128)}', space=vmem, size = 0x9000, scoped, tag = 'internal scratch']
  %s0 = inlined_call_operand.vmem [shape: f32[2,16,64], index: 0, kind: input, shape index: {}]
  %s1 = inlined_call_operand.vmem [shape: f32[64,768], index: 1, kind: input, shape index: {}]
  %s2 = inlined_call_operand.vmem [shape: f32[3,32,16], index: 2, kind: input, shape index: {}]
  %s3 = inlined_call_operand.vmem [shape: f32[1,256], index: 3, kind: input, shape index: {}]
  %s4 = inlined_call_operand.vmem [shape: f32[2,32,256], index: 4, kind: output, shape index: {}]
  %s5 = sld [smem:[#allocation0]]
  $region49: #{upward_pallas.1} parent=0
    _
  %s7 = ssub.s32 1, %s5
  %s8 = scalar_select 0, %s7, %s5
  loop: start=0, step=1, limit=4
  $region2: #{upward_pallas.1} parent=0 // loop_pre_header
    _
  $region3: #{upward_pallas.1} parent=0 // loop_header
    %s10 = sphi 0, %s14
    %p11 = scmp.ge.s32.totalorder %s10, 4
    %s20 = sphi 0, %s22
    %s23 = sphi 0, %s20
    %s24 = sphi 0, %s23
    %s40 = sphi 0, %s24
    %s44 = sphi 0, %s44
    %s46 = sphi 0, %s44
    %s47 = sphi 0, %s46
    %s61 = sphi 0, %s47
    %s65 = sphi 0, %s65
    %s67 = sphi 0, %s65
    %s68 = sphi 0, %s67
    %s82 = sphi 0, %s68
    %s86 = sphi 0, %s86
    %s88 = sphi 0, %s86
    %s89 = sphi 0, %s88
    %s103 = sphi 0, %s89
    %s109 = sphi 0, %s111
    %s112 = sphi 0, %s109
    %s113 = sphi 0, %s112
    %s129 = sphi 0, %s113
  $region4: #{upward_pallas.1} parent=0 // loop_header_branch
    %13 = sbr.rel (%p11) target = $region8
  $region5: #{upward_pallas.1} parent=0 // loop_body
    %s15 = ssub.s32 %s10, 1
    %s16 = ssub.s32 %s10, 2
    %s17 = sadd.s32 %s10, 1
    %s18 = ssub.s32 %s10, %s17
    %p19 = scmp.eq.s32.totalorder %s18, 0
    %s21 = sadd.s32 %s20, 1
    %s22 = scalar_select %p19, %s20, %s21
    %p25 = pneg %p19
    %p26 = scmp.eq.s32.totalorder %s10, 1
    %p27 = por %p25, %p26
    %p28 = scmp.ne.s32.totalorder %s20, %s23
    %p29 = scmp.eq.s32.totalorder %s10, 0
    %p30 = por %p28, %p29
    %p31 = scmp.ne.s32.totalorder %s20, %s23
    %p32 = scmp.eq.s32.totalorder %s15, 1
    %p33 = por %p31, %p32
    %p34 = scmp.ne.s32.totalorder %s23, %s24
    %p35 = scmp.eq.s32.totalorder %s15, 0
    %p36 = por %p34, %p35
    %p37 = scmp.ne.s32.totalorder %s23, %s24
    %p38 = scmp.eq.s32.totalorder %s16, 1
    %p39 = por %p37, %p38
    %p41 = scmp.ne.s32.totalorder %s24, %s40
    %p42 = scmp.eq.s32.totalorder %s16, 0
    %p43 = por %p41, %p42
    %s45 = sadd.s32 %s44, 1
    %p48 = scmp.eq.s32.totalorder %s10, 1
    %p49 = scmp.ne.s32.totalorder %s44, %s46
    %p50 = scmp.eq.s32.totalorder %s10, 0
    %p51 = por %p49, %p50
    %p52 = scmp.ne.s32.totalorder %s44, %s46
    %p53 = scmp.eq.s32.totalorder %s15, 1
    %p54 = por %p52, %p53
    %p55 = scmp.ne.s32.totalorder %s46, %s47
    %p56 = scmp.eq.s32.totalorder %s15, 0
    %p57 = por %p55, %p56
    %p58 = scmp.ne.s32.totalorder %s46, %s47
    %p59 = scmp.eq.s32.totalorder %s16, 1
    %p60 = por %p58, %p59
    %p62 = scmp.ne.s32.totalorder %s47, %s61
    %p63 = scmp.eq.s32.totalorder %s16, 0
    %p64 = por %p62, %p63
    %s66 = sadd.s32 %s65, 1
    %p69 = scmp.eq.s32.totalorder %s10, 1
    %p70 = scmp.ne.s32.totalorder %s65, %s67
    %p71 = scmp.eq.s32.totalorder %s10, 0
    %p72 = por %p70, %p71
    %p73 = scmp.ne.s32.totalorder %s65, %s67
    %p74 = scmp.eq.s32.totalorder %s15, 1
    %p75 = por %p73, %p74
    %p76 = scmp.ne.s32.totalorder %s67, %s68
    %p77 = scmp.eq.s32.totalorder %s15, 0
    %p78 = por %p76, %p77
    %p79 = scmp.ne.s32.totalorder %s67, %s68
    %p80 = scmp.eq.s32.totalorder %s16, 1
    %p81 = por %p79, %p80
    %p83 = scmp.ne.s32.totalorder %s68, %s82
    %p84 = scmp.eq.s32.totalorder %s16, 0
    %p85 = por %p83, %p84
    %s87 = sadd.s32 %s86, 1
    %p90 = scmp.eq.s32.totalorder %s10, 1
    %p91 = scmp.ne.s32.totalorder %s86, %s88
    %p92 = scmp.eq.s32.totalorder %s10, 0
    %p93 = por %p91, %p92
    %p94 = scmp.ne.s32.totalorder %s86, %s88
    %p95 = scmp.eq.s32.totalorder %s15, 1
    %p96 = por %p94, %p95
    %p97 = scmp.ne.s32.totalorder %s88, %s89
    %p98 = scmp.eq.s32.totalorder %s15, 0
    %p99 = por %p97, %p98
    %p100 = scmp.ne.s32.totalorder %s88, %s89
    %p101 = scmp.eq.s32.totalorder %s16, 1
    %p102 = por %p100, %p101
    %p104 = scmp.ne.s32.totalorder %s89, %s103
    %p105 = scmp.eq.s32.totalorder %s16, 0
    %p106 = por %p104, %p105
    %s107 = ssub.s32 %s10, %s17
    %p108 = scmp.eq.s32.totalorder %s107, 0
    %s110 = sadd.s32 %s109, 1
    %s111 = scalar_select %p108, %s109, %s110
    %p114 = pneg %p108
    %p115 = scmp.eq.s32.totalorder %s10, 1
    %p116 = por %p114, %p115
    %p117 = scmp.ne.s32.totalorder %s109, %s112
    %p118 = scmp.eq.s32.totalorder %s10, 0
    %p119 = por %p117, %p118
    %p120 = scmp.ne.s32.totalorder %s109, %s112
    %p121 = scmp.eq.s32.totalorder %s15, 1
    %p122 = por %p120, %p121
    %p123 = scmp.ne.s32.totalorder %s112, %s113
    %p124 = scmp.eq.s32.totalorder %s15, 0
    %p125 = por %p123, %p124
    %p126 = scmp.ne.s32.totalorder %s112, %s113
    %p127 = scmp.eq.s32.totalorder %s16, 1
    %p128 = por %p126, %p127
    %p130 = scmp.ne.s32.totalorder %s113, %s129
    %p131 = scmp.eq.s32.totalorder %s16, 0
    %p132 = por %p130, %p131
    %p133 = scmp.le.s32.totalorder 1, %s10
    %p134 = scmp.lt.s32.totalorder %s10, 3
    %p135 = pnand %p133, %p134
    %p136 = pneg %p135
    // Predicated region
    $region9: #{upward_pallas.1} parent=5 // pred_check
      _
    $region10: #{upward_pallas.1} parent=5 // pred_check_branch
      %138 = sbr.rel (%p135) target = $region12
    $region11: #{upward_pallas.1} parent=5 // pred_region
      %s139 = ssub.s32 %s10, 1
      // Predicated region
      $region13: #{upward_pallas.1} parent=11 // pred_check
        %p140 = pneg %p57
      $region14: #{upward_pallas.1} parent=11 // pred_check_branch
        %142 = sbr.rel (%p140) target = $region16
      $region15: #{upward_pallas.1} parent=11 // pred_region
        _
      $region16: #{upward_pallas.1} parent=11 // pred_fallthru
        _
      // Predicated region
      $region17: #{upward_pallas.1} parent=11 // pred_check
        %p143 = pneg %p78
      $region18: #{upward_pallas.1} parent=11 // pred_check_branch
        %145 = sbr.rel (%p143) target = $region20
      $region19: #{upward_pallas.1} parent=11 // pred_region
        _
      $region20: #{upward_pallas.1} parent=11 // pred_fallthru
        _
      // Predicated region
      $region21: #{upward_pallas.1} parent=11 // pred_check
        %p146 = pneg %p99
      $region22: #{upward_pallas.1} parent=11 // pred_check_branch
        %148 = sbr.rel (%p146) target = $region24
      $region23: #{upward_pallas.1} parent=11 // pred_region
        _
      $region24: #{upward_pallas.1} parent=11 // pred_fallthru
        _
    $region12: #{upward_pallas.1} parent=5 // pred_fallthru
      _
    %p149 = scmp.lt.s32.totalorder %s10, 2
    // Predicated region
    $region25: #{upward_pallas.1} parent=5 // pred_check
      %p150 = pneg %p149
    $region26: #{upward_pallas.1} parent=5 // pred_check_branch
      %152 = sbr.rel (%p150) target = $region28
    $region27: #{upward_pallas.1} parent=5 // pred_region
      // Predicated region
      $region29: #{upward_pallas.1} parent=27 // pred_check
        %p153 = pneg %p30
      $region30: #{upward_pallas.1} parent=27 // pred_check_branch
        %155 = sbr.rel (%p153) target = $region32
      $region31: #{upward_pallas.1} parent=27 // pred_region
        %p156 = scmp.lt.s32.totalorder %s10, 1
        %s157 = scalar_select %p156, %s10, 1
        %s158 = smul.addr %s157, 2
        %s159 = smul.addr %s158, 8
        %s160 = scalar_lea.vmem %s0, %s159
      $region32: #{upward_pallas.1} parent=27 // pred_fallthru
        _
    $region28: #{upward_pallas.1} parent=5 // pred_fallthru
      _
    %p161 = scmp.le.s32.totalorder 1, %s10
    %p162 = scmp.lt.s32.totalorder %s10, 3
    %p163 = pnand %p161, %p162
    %p164 = pneg %p163
    // Predicated region
    $region33: #{upward_pallas.1} parent=5 // pred_check
      _
    $region34: #{upward_pallas.1} parent=5 // pred_check_branch
      %166 = sbr.rel (%p163) target = $region36
    $region35: #{upward_pallas.1} parent=5 // pred_region
      %s167 = ssub.s32 %s10, 1
      %p168 = scmp.lt.s32.totalorder %s15, 1
      %s169 = scalar_select %p168, %s15, 1
      %s170 = smul.addr %s169, 2
      %s171 = smul.addr %s170, 8
      %s172 = scalar_lea.vmem %s0, %s171
      %p173 = pneg %p36
      %p174 = pneg %p33
      %p175 = pneg %p57
      %p176 = pneg %p54
      %p177 = pneg %p78
      %p178 = pneg %p75
      %p179 = pneg %p99
      %p180 = pneg %p96
      %p181 = pneg %p125
      %p182 = pneg %p122
      %p183 = scmp.lt.s32.totalorder %s15, 1
      %s184 = scalar_select %p183, %s15, 1
      %s185 = smul.addr %s184, 8
      %s186 = smul.addr %s185, 8
      %s187 = scalar_lea.vmem %s4, %s186
      %p188 = scmp.lt.s32.totalorder %s15, 1
      %s189 = scalar_select %p188, %s15, 1
      %s190 = smul.addr %s189, 2
      %s191 = smul.addr %s190, 8
      %s192 = scalar_lea.vmem %s0, %s191
      %p193 = scmp.lt.s32.totalorder %s15, 1
      %s194 = scalar_select %p193, %s15, 1
      %s195 = smul.addr %s194, 8
      %s196 = smul.addr %s195, 8
      %s197 = scalar_lea.vmem %s4, %s196
      %v198 = vld [vmem:[%s192] sm:$0xff]
      %v199 = vld [vmem:[%s192 + $0x8] sm:$0xff]
      %v200 = vld [vmem:[%s1] sm:$0xff]
      %v201 = vld [vmem:[%s1 + $0x8] sm:$0xff]
      %v202 = vld [vmem:[%s1 + $0x10] sm:$0xff]
      %v203 = vld [vmem:[%s1 + $0x18] sm:$0xff]
      %v204 = vld [vmem:[%s1 + $0x20] sm:$0xff]
      %v205 = vld [vmem:[%s1 + $0x28] sm:$0xff]
      %v206 = vld [vmem:[%s1 + $0x30] sm:$0xff]
      %v207 = vld [vmem:[%s1 + $0x38] sm:$0xff]
      %v208 = vld [vmem:[%s1 + $0x40] sm:$0xff]
      %v209 = vld [vmem:[%s1 + $0x48] sm:$0xff]
      %v210 = vld [vmem:[%s1 + $0x50] sm:$0xff]
      %v211 = vld [vmem:[%s1 + $0x58] sm:$0xff]
      %v212 = vld [vmem:[%s1 + $0x60] sm:$0xff]
      %v213 = vld [vmem:[%s1 + $0x68] sm:$0xff]
      %v214 = vld [vmem:[%s1 + $0x70] sm:$0xff]
      %v215 = vld [vmem:[%s1 + $0x78] sm:$0xff]
      %v216 = vld [vmem:[%s1 + $0x80] sm:$0xff]
      %v217 = vld [vmem:[%s1 + $0x88] sm:$0xff]
      %v218 = vld [vmem:[%s1 + $0x90] sm:$0xff]
      %v219 = vld [vmem:[%s1 + $0x98] sm:$0xff]
      %v220 = vld [vmem:[%s1 + $0xa0] sm:$0xff]
      %v221 = vld [vmem:[%s1 + $0xa8] sm:$0xff]
      %v222 = vld [vmem:[%s1 + $0xb0] sm:$0xff]
      %v223 = vld [vmem:[%s1 + $0xb8] sm:$0xff]
      %v224 = vld [vmem:[%s1 + $0xc0] sm:$0xff]
      %v225 = vld [vmem:[%s1 + $0xc8] sm:$0xff]
      %v226 = vld [vmem:[%s1 + $0xd0] sm:$0xff]
      %v227 = vld [vmem:[%s1 + $0xd8] sm:$0xff]
      %v228 = vld [vmem:[%s1 + $0xe0] sm:$0xff]
      %v229 = vld [vmem:[%s1 + $0xe8] sm:$0xff]
      %v230 = vld [vmem:[%s1 + $0xf0] sm:$0xff]
      %v231 = vld [vmem:[%s1 + $0xf8] sm:$0xff]
      %v232 = vld [vmem:[%s1 + $0x100] sm:$0xff]
      %v233 = vld [vmem:[%s1 + $0x108] sm:$0xff]
      %v234 = vld [vmem:[%s1 + $0x110] sm:$0xff]
      %v235 = vld [vmem:[%s1 + $0x118] sm:$0xff]
      %v236 = vld [vmem:[%s1 + $0x120] sm:$0xff]
      %v237 = vld [vmem:[%s1 + $0x128] sm:$0xff]
      %v238 = vld [vmem:[%s1 + $0x130] sm:$0xff]
      %v239 = vld [vmem:[%s1 + $0x138] sm:$0xff]
      %v240 = vld [vmem:[%s1 + $0x140] sm:$0xff]
      %v241 = vld [vmem:[%s1 + $0x148] sm:$0xff]
      %v242 = vld [vmem:[%s1 + $0x150] sm:$0xff]
      %v243 = vld [vmem:[%s1 + $0x158] sm:$0xff]
      %v244 = vld [vmem:[%s1 + $0x160] sm:$0xff]
      %v245 = vld [vmem:[%s1 + $0x168] sm:$0xff]
      %v246 = vld [vmem:[%s1 + $0x170] sm:$0xff]
      %v247 = vld [vmem:[%s1 + $0x178] sm:$0xff]
      %vm248 = vcmask 523264
      %v250 = vsel %vm248, %v198, 0
      %v253 = vsel %vm248, %v199, 0
      %255 = vmatpush.msra.mxu0 0.0
      %256 = vmatpush.msra.mxu0 0.0
      %257 = vmatpush.msra.mxu0 0.0
      %258 = vmatpush.msra.mxu0 0.0
      %259 = vmatpush.msra.mxu0 0.0
      %260 = vmatpush.msra.mxu0 0.0
      %261 = vmatpush.msra.mxu0 0.0
      %262 = vmatpush.msra.mxu0 0.0
      %263 = vmatpush.msra.mxu0 %v242
      %264 = vmatpush.msra.mxu0 %v236
      %265 = vmatpush.msra.mxu0 %v230
      %266 = vmatpush.msra.mxu0 %v224
      %267 = vmatpush.msra.mxu0 %v218
      %268 = vmatpush.msra.mxu0 %v212
      %269 = vmatpush.msra.mxu0 %v206
      %270 = vmatpush.msra.mxu0 %v200
      %271 = vmatmul.f32.gmra.mxu0 %v250
      %v272 = vpop.f32.mrf.mxu0
      %v273 = vadd.f32 0.0, %v272
      %274 = vmatmul.f32.gmra.mxu0 %v253
      %v275 = vpop.f32.mrf.mxu0
      %v276 = vadd.f32 0.0, %v275
      %277 = vdwg.mxu0
      %278 = vmatpush.msra.mxu0 0.0
      %279 = vmatpush.msra.mxu0 0.0
      %280 = vmatpush.msra.mxu0 0.0
      %281 = vmatpush.msra.mxu0 0.0
      %282 = vmatpush.msra.mxu0 0.0
      %283 = vmatpush.msra.mxu0 0.0
      %284 = vmatpush.msra.mxu0 0.0
      %285 = vmatpush.msra.mxu0 0.0
      %286 = vmatpush.msra.mxu0 %v243
      %287 = vmatpush.msra.mxu0 %v237
      %288 = vmatpush.msra.mxu0 %v231
      %289 = vmatpush.msra.mxu0 %v225
      %290 = vmatpush.msra.mxu0 %v219
      %291 = vmatpush.msra.mxu0 %v213
      %292 = vmatpush.msra.mxu0 %v207
      %293 = vmatpush.msra.mxu0 %v201
      %294 = vmatmul.f32.gmra.mxu0 %v250
      %v295 = vpop.f32.mrf.mxu0
      %v296 = vadd.f32 0.0, %v295
      %297 = vmatmul.f32.gmra.mxu0 %v253
      %v298 = vpop.f32.mrf.mxu0
      %v299 = vadd.f32 0.0, %v298
      %300 = vdwg.mxu0
      %301 = vmatpush.msra.mxu0 0.0
      %302 = vmatpush.msra.mxu0 0.0
      %303 = vmatpush.msra.mxu0 0.0
      %304 = vmatpush.msra.mxu0 0.0
      %305 = vmatpush.msra.mxu0 0.0
      %306 = vmatpush.msra.mxu0 0.0
      %307 = vmatpush.msra.mxu0 0.0
      %308 = vmatpush.msra.mxu0 0.0
      %309 = vmatpush.msra.mxu0 %v244
      %310 = vmatpush.msra.mxu0 %v238
      %311 = vmatpush.msra.mxu0 %v232
      %312 = vmatpush.msra.mxu0 %v226
      %313 = vmatpush.msra.mxu0 %v220
      %314 = vmatpush.msra.mxu0 %v214
      %315 = vmatpush.msra.mxu0 %v208
      %316 = vmatpush.msra.mxu0 %v202
      %317 = vmatmul.f32.gmra.mxu0 %v250
      %v318 = vpop.f32.mrf.mxu0
      %v319 = vadd.f32 0.0, %v318
      %320 = vmatmul.f32.gmra.mxu0 %v253
      %v321 = vpop.f32.mrf.mxu0
      %v322 = vadd.f32 0.0, %v321
      %323 = vdwg.mxu0
      %324 = vmatpush.msra.mxu0 0.0
      %325 = vmatpush.msra.mxu0 0.0
      %326 = vmatpush.msra.mxu0 0.0
      %327 = vmatpush.msra.mxu0 0.0
      %328 = vmatpush.msra.mxu0 0.0
      %329 = vmatpush.msra.mxu0 0.0
      %330 = vmatpush.msra.mxu0 0.0
      %331 = vmatpush.msra.mxu0 0.0
      %332 = vmatpush.msra.mxu0 %v245
      %333 = vmatpush.msra.mxu0 %v239
      %334 = vmatpush.msra.mxu0 %v233
      %335 = vmatpush.msra.mxu0 %v227
      %336 = vmatpush.msra.mxu0 %v221
      %337 = vmatpush.msra.mxu0 %v215
      %338 = vmatpush.msra.mxu0 %v209
      %339 = vmatpush.msra.mxu0 %v203
      %340 = vmatmul.f32.gmra.mxu0 %v250
      %v341 = vpop.f32.mrf.mxu0
      %v342 = vadd.f32 0.0, %v341
      %343 = vmatmul.f32.gmra.mxu0 %v253
      %v344 = vpop.f32.mrf.mxu0
      %v345 = vadd.f32 0.0, %v344
      %346 = vdwg.mxu0
      %347 = vmatpush.msra.mxu0 0.0
      %348 = vmatpush.msra.mxu0 0.0
      %349 = vmatpush.msra.mxu0 0.0
      %350 = vmatpush.msra.mxu0 0.0
      %351 = vmatpush.msra.mxu0 0.0
      %352 = vmatpush.msra.mxu0 0.0
      %353 = vmatpush.msra.mxu0 0.0
      %354 = vmatpush.msra.mxu0 0.0
      %355 = vmatpush.msra.mxu0 %v246
      %356 = vmatpush.msra.mxu0 %v240
      %357 = vmatpush.msra.mxu0 %v234
      %358 = vmatpush.msra.mxu0 %v228
      %359 = vmatpush.msra.mxu0 %v222
      %360 = vmatpush.msra.mxu0 %v216
      %361 = vmatpush.msra.mxu0 %v210
      %362 = vmatpush.msra.mxu0 %v204
      %363 = vmatmul.f32.gmra.mxu0 %v250
      %v364 = vpop.f32.mrf.mxu0
      %v365 = vadd.f32 0.0, %v364
      %366 = vmatmul.f32.gmra.mxu0 %v253
      %v367 = vpop.f32.mrf.mxu0
      %v368 = vadd.f32 0.0, %v367
      %369 = vdwg.mxu0
      %370 = vmatpush.msra.mxu0 0.0
      %371 = vmatpush.msra.mxu0 0.0
      %372 = vmatpush.msra.mxu0 0.0
      %373 = vmatpush.msra.mxu0 0.0
      %374 = vmatpush.msra.mxu0 0.0
      %375 = vmatpush.msra.mxu0 0.0
      %376 = vmatpush.msra.mxu0 0.0
      %377 = vmatpush.msra.mxu0 0.0
      %378 = vmatpush.msra.mxu0 %v247
      %379 = vmatpush.msra.mxu0 %v241
      %380 = vmatpush.msra.mxu0 %v235
      %381 = vmatpush.msra.mxu0 %v229
      %382 = vmatpush.msra.mxu0 %v223
      %383 = vmatpush.msra.mxu0 %v217
      %384 = vmatpush.msra.mxu0 %v211
      %385 = vmatpush.msra.mxu0 %v205
      %386 = vmatmul.f32.gmra.mxu0 %v250
      %v387 = vpop.f32.mrf.mxu0
      %v388 = vadd.f32 0.0, %v387
      %389 = vmatmul.f32.gmra.mxu0 %v253
      %v390 = vpop.f32.mrf.mxu0
      %v391 = vadd.f32 0.0, %v390
      %392 = vdwg.mxu0
      %v393 = vld [vmem:[%s3] sm:$0x3]
      %v394 = vld [vmem:[%s2] sm:$0xff]
      %v395 = vld [vmem:[%s2 + $0x8] sm:$0xff]
      %v396 = vld [vmem:[%s2 + $0x10] sm:$0xff]
      %v397 = vld [vmem:[%s2 + $0x18] sm:$0xff]
      %s398 = scalar_lea.vmem %s2, 32
      %v399 = vld [vmem:[%s398] sm:$0xff]
      %v400 = vld [vmem:[%s398 + $0x8] sm:$0xff]
      %v401 = vld [vmem:[%s398 + $0x10] sm:$0xff]
      %v402 = vld [vmem:[%s398 + $0x18] sm:$0xff]
      %s403 = scalar_lea.vmem %s2, 64
      %v404 = vld [vmem:[%s403] sm:$0xff]
      %v405 = vld [vmem:[%s403 + $0x8] sm:$0xff]
      %v406 = vld [vmem:[%s403 + $0x10] sm:$0xff]
      %v407 = vld [vmem:[%s403 + $0x18] sm:$0xff]
      %vm408 = vcmask 130048
      %v410 = vsel %vm408, %v399, 0
      %v413 = vsel %vm408, %v400, 0
      %v416 = vsel %vm408, %v401, 0
      %v419 = vsel %vm408, %v402, 0
      %421 = vmatpush.msra.mxu0 0.0
      %422 = vmatpush.msra.mxu0 0.0
      %423 = vmatpush.msra.mxu0 0.0
      %424 = vmatpush.msra.mxu0 0.0
      %425 = vmatpush.msra.mxu0 0.0
      %426 = vmatpush.msra.mxu0 0.0
      %427 = vmatpush.msra.mxu0 0.0
      %428 = vmatpush.msra.mxu0 0.0
      %429 = vmatpush.msra.mxu0 0.0
      %430 = vmatpush.msra.mxu0 0.0
      %431 = vmatpush.msra.mxu0 0.0
      %432 = vmatpush.msra.mxu0 0.0
      %433 = vmatpush.msra.mxu0 0.0
      %434 = vmatpush.msra.mxu0 0.0
      %435 = vmatpush.msra.mxu0 %v322
      %436 = vmatpush.msra.mxu0 %v319
      %437 = vmatmul.f32.gmra.mxu0 %v410
      %v438 = vpop.f32.mrf.mxu0
      %v439 = vadd.f32 0.0, %v438
      %440 = vmatmul.f32.gmra.mxu0 %v413
      %v441 = vpop.f32.mrf.mxu0
      %v442 = vadd.f32 0.0, %v441
      %443 = vmatmul.f32.gmra.mxu0 %v416
      %v444 = vpop.f32.mrf.mxu0
      %v445 = vadd.f32 0.0, %v444
      %446 = vmatmul.f32.gmra.mxu0 %v419
      %v447 = vpop.f32.mrf.mxu0
      %v448 = vadd.f32 0.0, %v447
      %449 = vdwg.mxu0
      %450 = vmatpush.msra.mxu0 0.0
      %451 = vmatpush.msra.mxu0 0.0
      %452 = vmatpush.msra.mxu0 0.0
      %453 = vmatpush.msra.mxu0 0.0
      %454 = vmatpush.msra.mxu0 0.0
      %455 = vmatpush.msra.mxu0 0.0
      %456 = vmatpush.msra.mxu0 0.0
      %457 = vmatpush.msra.mxu0 0.0
      %458 = vmatpush.msra.mxu0 0.0
      %459 = vmatpush.msra.mxu0 0.0
      %460 = vmatpush.msra.mxu0 0.0
      %461 = vmatpush.msra.mxu0 0.0
      %462 = vmatpush.msra.mxu0 0.0
      %463 = vmatpush.msra.mxu0 0.0
      %464 = vmatpush.msra.mxu0 %v345
      %465 = vmatpush.msra.mxu0 %v342
      %466 = vmatmul.f32.gmra.mxu0 %v410
      %v467 = vpop.f32.mrf.mxu0
      %v468 = vadd.f32 0.0, %v467
      %469 = vmatmul.f32.gmra.mxu0 %v413
      %v470 = vpop.f32.mrf.mxu0
      %v471 = vadd.f32 0.0, %v470
      %472 = vmatmul.f32.gmra.mxu0 %v416
      %v473 = vpop.f32.mrf.mxu0
      %v474 = vadd.f32 0.0, %v473
      %475 = vmatmul.f32.gmra.mxu0 %v419
      %v476 = vpop.f32.mrf.mxu0
      %v477 = vadd.f32 0.0, %v476
      %478 = vdwg.mxu0
      %v480 = vsel %vm408, %v394, 0
      %v483 = vsel %vm408, %v395, 0
      %v486 = vsel %vm408, %v396, 0
      %v489 = vsel %vm408, %v397, 0
      %491 = vmatpush.msra.mxu0 0.0
      %492 = vmatpush.msra.mxu0 0.0
      %493 = vmatpush.msra.mxu0 0.0
      %494 = vmatpush.msra.mxu0 0.0
      %495 = vmatpush.msra.mxu0 0.0
      %496 = vmatpush.msra.mxu0 0.0
      %497 = vmatpush.msra.mxu0 0.0
      %498 = vmatpush.msra.mxu0 0.0
      %499 = vmatpush.msra.mxu0 0.0
      %500 = vmatpush.msra.mxu0 0.0
      %501 = vmatpush.msra.mxu0 0.0
      %502 = vmatpush.msra.mxu0 0.0
      %503 = vmatpush.msra.mxu0 0.0
      %504 = vmatpush.msra.mxu0 0.0
      %505 = vmatpush.msra.mxu0 %v276
      %506 = vmatpush.msra.mxu0 %v273
      %507 = vmatmul.f32.gmra.mxu0 %v480
      %v508 = vpop.f32.mrf.mxu0
      %v509 = vadd.f32 %v439, %v508
      %510 = vmatmul.f32.gmra.mxu0 %v483
      %v511 = vpop.f32.mrf.mxu0
      %v512 = vadd.f32 %v442, %v511
      %513 = vmatmul.f32.gmra.mxu0 %v486
      %v514 = vpop.f32.mrf.mxu0
      %v515 = vadd.f32 %v445, %v514
      %516 = vmatmul.f32.gmra.mxu0 %v489
      %v517 = vpop.f32.mrf.mxu0
      %v518 = vadd.f32 %v448, %v517
      %519 = vdwg.mxu0
      %520 = vmatpush.msra.mxu0 0.0
      %521 = vmatpush.msra.mxu0 0.0
      %522 = vmatpush.msra.mxu0 0.0
      %523 = vmatpush.msra.mxu0 0.0
      %524 = vmatpush.msra.mxu0 0.0
      %525 = vmatpush.msra.mxu0 0.0
      %526 = vmatpush.msra.mxu0 0.0
      %527 = vmatpush.msra.mxu0 0.0
      %528 = vmatpush.msra.mxu0 0.0
      %529 = vmatpush.msra.mxu0 0.0
      %530 = vmatpush.msra.mxu0 0.0
      %531 = vmatpush.msra.mxu0 0.0
      %532 = vmatpush.msra.mxu0 0.0
      %533 = vmatpush.msra.mxu0 0.0
      %534 = vmatpush.msra.mxu0 %v299
      %535 = vmatpush.msra.mxu0 %v296
      %536 = vmatmul.f32.gmra.mxu0 %v480
      %v537 = vpop.f32.mrf.mxu0
      %v538 = vadd.f32 %v468, %v537
      %539 = vmatmul.f32.gmra.mxu0 %v483
      %v540 = vpop.f32.mrf.mxu0
      %v541 = vadd.f32 %v471, %v540
      %542 = vmatmul.f32.gmra.mxu0 %v486
      %v543 = vpop.f32.mrf.mxu0
      %v544 = vadd.f32 %v474, %v543
      %545 = vmatmul.f32.gmra.mxu0 %v489
      %v546 = vpop.f32.mrf.mxu0
      %v547 = vadd.f32 %v477, %v546
      %548 = vdwg.mxu0
      %v550 = vsel %vm408, %v404, 0
      %v553 = vsel %vm408, %v405, 0
      %v556 = vsel %vm408, %v406, 0
      %v559 = vsel %vm408, %v407, 0
      %561 = vmatpush.msra.mxu0 0.0
      %562 = vmatpush.msra.mxu0 0.0
      %563 = vmatpush.msra.mxu0 0.0
      %564 = vmatpush.msra.mxu0 0.0
      %565 = vmatpush.msra.mxu0 0.0
      %566 = vmatpush.msra.mxu0 0.0
      %567 = vmatpush.msra.mxu0 0.0
      %568 = vmatpush.msra.mxu0 0.0
      %569 = vmatpush.msra.mxu0 0.0
      %570 = vmatpush.msra.mxu0 0.0
      %571 = vmatpush.msra.mxu0 0.0
      %572 = vmatpush.msra.mxu0 0.0
      %573 = vmatpush.msra.mxu0 0.0
      %574 = vmatpush.msra.mxu0 0.0
      %575 = vmatpush.msra.mxu0 %v368
      %576 = vmatpush.msra.mxu0 %v365
      %577 = vmatmul.f32.gmra.mxu0 %v550
      %v578 = vpop.f32.mrf.mxu0
      %v579 = vadd.f32 0.0, %v578
      %580 = vmatmul.f32.gmra.mxu0 %v553
      %v581 = vpop.f32.mrf.mxu0
      %v582 = vadd.f32 0.0, %v581
      %583 = vmatmul.f32.gmra.mxu0 %v556
      %v584 = vpop.f32.mrf.mxu0
      %v585 = vadd.f32 0.0, %v584
      %586 = vmatmul.f32.gmra.mxu0 %v559
      %v587 = vpop.f32.mrf.mxu0
      %v588 = vadd.f32 0.0, %v587
      %589 = vdwg.mxu0
      %590 = vmatpush.msra.mxu0 0.0
      %591 = vmatpush.msra.mxu0 0.0
      %592 = vmatpush.msra.mxu0 0.0
      %593 = vmatpush.msra.mxu0 0.0
      %594 = vmatpush.msra.mxu0 0.0
      %595 = vmatpush.msra.mxu0 0.0
      %596 = vmatpush.msra.mxu0 0.0
      %597 = vmatpush.msra.mxu0 0.0
      %598 = vmatpush.msra.mxu0 0.0
      %599 = vmatpush.msra.mxu0 0.0
      %600 = vmatpush.msra.mxu0 0.0
      %601 = vmatpush.msra.mxu0 0.0
      %602 = vmatpush.msra.mxu0 0.0
      %603 = vmatpush.msra.mxu0 0.0
      %604 = vmatpush.msra.mxu0 %v391
      %605 = vmatpush.msra.mxu0 %v388
      %606 = vmatmul.f32.gmra.mxu0 %v550
      %v607 = vpop.f32.mrf.mxu0
      %v608 = vadd.f32 0.0, %v607
      %609 = vmatmul.f32.gmra.mxu0 %v553
      %v610 = vpop.f32.mrf.mxu0
      %v611 = vadd.f32 0.0, %v610
      %612 = vmatmul.f32.gmra.mxu0 %v556
      %v613 = vpop.f32.mrf.mxu0
      %v614 = vadd.f32 0.0, %v613
      %615 = vmatmul.f32.gmra.mxu0 %v559
      %v616 = vpop.f32.mrf.mxu0
      %v617 = vadd.f32 0.0, %v616
      %618 = vdwg.mxu0
      %v619 = vadd.f32 %v509, %v579
      %v620 = vadd.f32 %v538, %v608
      %v621 = vadd.f32 %v512, %v582
      %v622 = vadd.f32 %v541, %v611
      %v623 = vadd.f32 %v515, %v585
      %v624 = vadd.f32 %v544, %v614
      %v625 = vadd.f32 %v518, %v588
      %v626 = vadd.f32 %v547, %v617
      %v628 = vperm.slane %v393, 0
      %v629 = vperm.slane %v393, 1
      %v632 = vadd.f32 %v619, %v628
      %v633 = vadd.f32 %v620, %v629
      %v634 = vadd.f32 %v621, %v628
      %v635 = vadd.f32 %v622, %v629
      %v636 = vadd.f32 %v623, %v628
      %v637 = vadd.f32 %v624, %v629
      %v638 = vadd.f32 %v625, %v628
      %v639 = vadd.f32 %v626, %v629
      %640 = vst [vmem:[%s197] sm:$0xff] %v632
      %641 = vst [vmem:[%s197 + $0x8] sm:$0xff] %v633
      %642 = vst [vmem:[%s197 + $0x10] sm:$0xff] %v634
      %643 = vst [vmem:[%s197 + $0x18] sm:$0xff] %v635
      %644 = vst [vmem:[%s197 + $0x20] sm:$0xff] %v636
      %645 = vst [vmem:[%s197 + $0x28] sm:$0xff] %v637
      %646 = vst [vmem:[%s197 + $0x30] sm:$0xff] %v638
      %647 = vst [vmem:[%s197 + $0x38] sm:$0xff] %v639
      %p648 = scmp.lt.s32.totalorder %s15, 1
      %s649 = scalar_select %p648, %s15, 1
      %s650 = smul.addr %s649, 8
      %s651 = smul.addr %s650, 8
      %s652 = scalar_lea.vmem %s4, %s651
      // Predicated region
      $region37: #{upward_pallas.1} parent=35 // pred_check
        %p653 = pneg %p122
      $region38: #{upward_pallas.1} parent=35 // pred_check_branch
        %655 = sbr.rel (%p653) target = $region40
      $region39: #{upward_pallas.1} parent=35 // pred_region
        _
      $region40: #{upward_pallas.1} parent=35 // pred_fallthru
        _
    $region36: #{upward_pallas.1} parent=5 // pred_fallthru
      _
    %p656 = scmp.le.s32.totalorder 2, %s10
    // Predicated region
    $region41: #{upward_pallas.1} parent=5 // pred_check
      %p657 = pneg %p656
    $region42: #{upward_pallas.1} parent=5 // pred_check_branch
      %659 = sbr.rel (%p657) target = $region44
    $region43: #{upward_pallas.1} parent=5 // pred_region
      %s660 = ssub.s32 %s10, 2
      // Predicated region
      $region45: #{upward_pallas.1} parent=43 // pred_check
        %p661 = pneg %p128
      $region46: #{upward_pallas.1} parent=43 // pred_check_branch
        %663 = sbr.rel (%p661) target = $region48
      $region47: #{upward_pallas.1} parent=43 // pred_region
        %p664 = scmp.lt.s32.totalorder %s16, 1
        %s665 = scalar_select %p664, %s16, 1
        %s666 = smul.addr %s665, 8
        %s667 = smul.addr %s666, 8
        %s668 = scalar_lea.vmem %s4, %s667
      $region48: #{upward_pallas.1} parent=43 // pred_fallthru
        _
    $region44: #{upward_pallas.1} parent=5 // pred_fallthru
      _
  $region6: #{upward_pallas.1} parent=0 // loop_footer
    %s14 = sadd.s32 1, %s10
  $region7: #{upward_pallas.1} parent=0 // loop_footer_branch
    %9 = sbr.rel target = $region3
  $region8: #{upward_pallas.1} parent=0 // loop_exit
    _

</llo_original>
